<compile_context>
chip_gen: v6e
topology: v6e:2x2x1
jax: 0.10.0
libtpu: 0.0.40
codegen_flags: <defaults>
</compile_context>

<pallas_src>
import jax
import jax.numpy as jnp
from jax.experimental import pallas as pl
from jax.experimental.pallas import tpu as pltpu


_VMEM_LIMIT_BYTES = 48 * 1024 * 1024   # raised scoped-VMEM limit (safe on v5e/v6e/v7x)
_TILE_BUDGET_BYTES = 24 * 1024 * 1024  # cap on 2x-double-buffered (in+out) feat tile


# ----------------------------------------------------------------------------
# Kernel 1: fused single-pass GFA (whole (C, N) tile per batch element).
# ----------------------------------------------------------------------------
def gfa_fused_kernel(feat_ref, prm_ref, wmlp_ref, out_ref):
    feat = feat_ref[0]                                   # (C, N), native dtype
    prm = prm_ref[...]                                   # (C, 8) f32
    wfc = prm[:, 0:1]                                    # (C, 1) fc conv weight
    scale = prm[:, 1:2]                                  # (C, 1) folded BN scale
    shift = prm[:, 2:3]                                  # (C, 1) folded BN shift
    gamma = prm[:, 3:4]                                  # (C, 1) LN weight
    beta = prm[:, 4:5]                                   # (C, 1) LN bias

    # fc (1x1 conv C->1): VPU multiply + sublane reduce -> lane-dense (1, N).
    # (fc bias dropped: it cancels in the softmax.)
    logits = jnp.sum(feat * wfc, axis=0, keepdims=True)  # (1, N) f32
    m = jnp.max(logits, axis=-1, keepdims=True)          # (1, 1)
    e = jnp.exp(logits - m)                              # (1, N)
    att = e / jnp.sum(e, axis=-1, keepdims=True)         # (1, N)

    # Attention-weighted pooling of the RAW features (algebraic rewrite).
    pooled = jnp.sum(feat * att, axis=-1, keepdims=True)         # (C, 1)

    # 1x1 conv C->C applied once to the pooled vector; BN folded to scale/shift.
    g = jnp.dot(wmlp_ref[...], pooled,
                preferred_element_type=jnp.float32)              # (C, 1)
    g = g * scale + shift

    # LayerNorm over channels (sublane reduce) + ReLU.
    mu = jnp.mean(g, axis=0, keepdims=True)
    var = jnp.mean((g - mu) ** 2, axis=0, keepdims=True)
    gn = (g - mu) * jax.lax.rsqrt(var + 1e-5)
    gn = jnp.maximum(gn * gamma + beta, 0.0)                     # (C, 1)

    # Residual: broadcast the global vector over all N points.
    out_ref[0] = feat + gn.astype(feat.dtype)


# ----------------------------------------------------------------------------
# Kernel 2a: tiled pooling pass with online softmax (grid = (B, N // tn)).
# Produces the post-LN/ReLU global vector g: (B, C, 1).
# ----------------------------------------------------------------------------
def gfa_pool_kernel(feat_ref, prm_ref, wmlp_ref, g_ref, m_sc, l_sc, acc_sc):
    t = pl.program_id(1)

    @pl.when(t == 0)
    def _():
        m_sc[...] = jnp.full(m_sc.shape, -jnp.inf, m_sc.dtype)
        l_sc[...] = jnp.zeros(l_sc.shape, l_sc.dtype)
        acc_sc[...] = jnp.zeros(acc_sc.shape, acc_sc.dtype)

    feat = feat_ref[0]                                   # (C, tn)
    prm = prm_ref[...]                                   # (C, 8)
    wfc = prm[:, 0:1]                                    # (C, 1)

    # Lane-dense logits for this tile + online-softmax update.
    logits = jnp.sum(feat * wfc, axis=0, keepdims=True)          # (1, tn)
    m_new = jnp.maximum(m_sc[...],
                        jnp.max(logits, axis=-1, keepdims=True)) # (1, 1)
    alpha = jnp.exp(m_sc[...] - m_new)                           # (1, 1)
    p = jnp.exp(logits - m_new)                                  # (1, tn)
    l_sc[...] = alpha * l_sc[...] + jnp.sum(p, axis=-1, keepdims=True)
    acc_sc[...] = alpha * acc_sc[...] + jnp.sum(feat * p, axis=-1, keepdims=True)
    m_sc[...] = m_new

    @pl.when(t == pl.num_programs(1) - 1)
    def _():
        scale, shift = prm[:, 1:2], prm[:, 2:3]
        gamma, beta = prm[:, 3:4], prm[:, 4:5]
        pooled = acc_sc[...] / l_sc[...]                         # (C, 1)
        g = jnp.dot(wmlp_ref[...], pooled,
                    preferred_element_type=jnp.float32)          # (C, 1)
        g = g * scale + shift
        mu = jnp.mean(g, axis=0, keepdims=True)
        var = jnp.mean((g - mu) ** 2, axis=0, keepdims=True)
        gn = (g - mu) * jax.lax.rsqrt(var + 1e-5)
        gn = jnp.maximum(gn * gamma + beta, 0.0)
        g_ref[0] = gn.astype(g_ref.dtype)


# ----------------------------------------------------------------------------
# Kernel 2b: broadcast-residual pass (grid = (B, N // tn), fully parallel).
# ----------------------------------------------------------------------------
def gfa_residual_kernel(feat_ref, g_ref, out_ref):
    feat = feat_ref[0]                                   # (C, tn)
    out_ref[0] = feat + g_ref[0].astype(feat.dtype)


# ----------------------------------------------------------------------------
# Wrapper.
# ----------------------------------------------------------------------------
def _fold_and_pack(params, C):
    """Fold eval-mode BN into per-channel scale/shift and pack the per-channel
    parameters into a single (C, 8) operand (cols: wfc, scale, shift, ln_g, ln_b)."""
    eps = 1e-5
    scale = params["bn_gamma"] * jax.lax.rsqrt(params["bn_var"] + eps)
    shift = params["bn_beta"] - params["bn_mean"] * scale
    prm = jnp.zeros((C, 8), jnp.float32)
    prm = prm.at[:, 0].set(params["fc_w"].astype(jnp.float32))
    prm = prm.at[:, 1].set(scale.astype(jnp.float32))
    prm = prm.at[:, 2].set(shift.astype(jnp.float32))
    prm = prm.at[:, 3].set(params["ln_gamma"].astype(jnp.float32))
    prm = prm.at[:, 4].set(params["ln_beta"].astype(jnp.float32))
    # NOTE: fc bias is intentionally not packed -- it cancels in the softmax.
    return prm, params["mlp_w"].astype(jnp.float32)


def _pick_tile_n(C, N, itemsize):
    # Pipelined working set per grid step ~= 2 (double buf) * (in + out) tiles.
    per_lane = 4 * C * itemsize
    if per_lane * N <= _TILE_BUDGET_BYTES:
        return N                                         # fused single-pass path
    max_tn = max(128, (_TILE_BUDGET_BYTES // per_lane) // 128 * 128)
    tn = (min(max_tn, N) // 128) * 128
    while tn >= 128:
        if N % tn == 0:
            return tn
        tn -= 128
    # TODO(synk): mask the ragged N tail so non-divisible N can also be tiled.
    return N


def gfa_forward(feature_nchw, params, *, tile_n=None):
    """feature_nchw: (B, C, N, 1). Returns (B, C, N, 1)."""
    B, C, N, W = feature_nchw.shape
    assert W == 1
    x = feature_nchw[..., 0]                             # (B, C, N) -- free reshape
    prm, wmlp = _fold_and_pack(params, C)

    if tile_n is None:
        tile_n = _pick_tile_n(C, N, x.dtype.itemsize)

    cparams = lambda sem: pltpu.CompilerParams(
        dimension_semantics=sem, vmem_limit_bytes=_VMEM_LIMIT_BYTES)

    if tile_n >= N:
        # ---- fused single-pass kernel: one read + one write of feat ----
        out = pl.pallas_call(
            gfa_fused_kernel,
            out_shape=jax.ShapeDtypeStruct((B, C, N), x.dtype),
            grid_spec=pltpu.PrefetchScalarGridSpec(
                num_scalar_prefetch=0,
                grid=(B,),
                in_specs=[
                    pl.BlockSpec((1, C, N), lambda b: (b, 0, 0)),
                    pl.BlockSpec((C, 8), lambda b: (0, 0)),
                    pl.BlockSpec((C, C), lambda b: (0, 0)),
                ],
                out_specs=pl.BlockSpec((1, C, N), lambda b: (b, 0, 0)),
            ),
            compiler_params=cparams(("parallel",)),
        )(x, prm, wmlp)
        return out[..., None]

    # ---- tiled two-pass path (large N) ----
    assert N % tile_n == 0 and tile_n % 128 == 0, "tile_n must be a 128-multiple dividing N"
    nt = N // tile_n

    g = pl.pallas_call(
        gfa_pool_kernel,
        out_shape=jax.ShapeDtypeStruct((B, C, 1), jnp.float32),
        grid_spec=pltpu.PrefetchScalarGridSpec(
            num_scalar_prefetch=0,
            grid=(B, nt),
            in_specs=[
                pl.BlockSpec((1, C, tile_n), lambda b, t: (b, 0, t)),
                pl.BlockSpec((C, 8), lambda b, t: (0, 0)),
                pl.BlockSpec((C, C), lambda b, t: (0, 0)),
            ],
            out_specs=pl.BlockSpec((1, C, 1), lambda b, t: (b, 0, 0)),
            scratch_shapes=[
                pltpu.VMEM((1, 1), jnp.float32),   # running max
                pltpu.VMEM((1, 1), jnp.float32),   # running denom
                pltpu.VMEM((C, 1), jnp.float32),   # weighted-feature accumulator
            ],
        ),
        compiler_params=cparams(("parallel", "arbitrary")),
    )(x, prm, wmlp)

    out = pl.pallas_call(
        gfa_residual_kernel,
        out_shape=jax.ShapeDtypeStruct((B, C, N), x.dtype),
        grid_spec=pltpu.PrefetchScalarGridSpec(
            num_scalar_prefetch=0,
            grid=(B, nt),
            in_specs=[
                pl.BlockSpec((1, C, tile_n), lambda b, t: (b, 0, t)),
                pl.BlockSpec((1, C, 1), lambda b, t: (b, 0, 0)),
            ],
            out_specs=pl.BlockSpec((1, C, tile_n), lambda b, t: (b, 0, t)),
        ),
        compiler_params=cparams(("parallel", "parallel")),
    )(x, g)
    return out[..., None]


# ----------------------------------------------------------------------------
# Pure-JAX reference (PyTorch semantics, eval-mode BN) and parameter builder.
# ----------------------------------------------------------------------------
def gfa_reference(feature_nchw, params):
    eps = 1e-5
    x = feature_nchw[..., 0]                                         # (B, C, N)
    logits = jnp.einsum("c,bcn->bn", params["fc_w"], x) + params["fc_b"]
    att = jax.nn.softmax(logits, axis=-1)                            # (B, N)
    f = jnp.einsum("oc,bcn->bon", params["mlp_w"], x)                # (B, C, N)
    f = (f - params["bn_mean"][None, :, None]) * jax.lax.rsqrt(
        params["bn_var"][None, :, None] + eps)
    f = f * params["bn_gamma"][None, :, None] + params["bn_beta"][None, :, None]
    g = jnp.einsum("bn,bcn->bc", att, f)                             # (B, C)
    mu = jnp.mean(g, axis=-1, keepdims=True)
    var = jnp.mean((g - mu) ** 2, axis=-1, keepdims=True)
    gn = (g - mu) * jax.lax.rsqrt(var + eps)
    gn = gn * params["ln_gamma"][None, :] + params["ln_beta"][None, :]
    gn = jnp.maximum(gn, 0.0)
    out = x + gn[:, :, None]
    return out[..., None]


def make_params(key, d_in):
    ks = jax.random.split(key, 9)
    return {
        # fc: Conv2d(d_in, 1, 1x1) with bias
        "fc_w": jax.random.normal(ks[0], (d_in,), jnp.float32) * 0.1,
        "fc_b": jax.random.normal(ks[1], (), jnp.float32) * 0.1,
        # mlp: Conv2d(d_in, d_in, 1x1, bn=True) -> weight (out, in), eval-mode BN
        "mlp_w": jax.random.normal(ks[2], (d_in, d_in), jnp.float32) * 0.1,
        "bn_gamma": 1.0 + 0.1 * jax.random.normal(ks[3], (d_in,), jnp.float32),
        "bn_beta": 0.1 * jax.random.normal(ks[4], (d_in,), jnp.float32),
        "bn_mean": 0.05 * jax.random.normal(ks[5], (d_in,), jnp.float32),
        "bn_var": jnp.abs(1.0 + 0.1 * jax.random.normal(ks[6], (d_in,), jnp.float32)),
        # LayerNorm(d_in)
        "ln_gamma": 1.0 + 0.1 * jax.random.normal(ks[7], (d_in,), jnp.float32),
        "ln_beta": 0.1 * jax.random.normal(ks[8], (d_in,), jnp.float32),
    }


if __name__ == "__main__":
    key = jax.random.PRNGKey(0)
    kx1, kx2, kp = jax.random.split(key, 3)
    C = 32
    params = make_params(kp, C)

    # Case 1: small N -> fused single-pass kernel (whole (C, N) block per batch).
    feat1 = jax.random.normal(kx1, (2, C, 16, 1), jnp.float32)
    out1 = jax.block_until_ready(gfa_forward(feat1, params))
    ref1 = gfa_reference(feat1, params)
    assert out1.shape == feat1.shape
    assert jnp.allclose(out1, ref1, atol=1e-4, rtol=1e-4), "fused path mismatch vs reference"

    # Case 2: larger N -> tiled two-pass path (online softmax over 128-wide N tiles).
    feat2 = jax.random.normal(kx2, (2, C, 256, 1), jnp.float32)
    out2 = jax.block_until_ready(gfa_forward(feat2, params, tile_n=128))
    ref2 = gfa_reference(feat2, params)
    assert out2.shape == feat2.shape
    assert jnp.allclose(out2, ref2, atol=1e-4, rtol=1e-4), "tiled path mismatch vs reference"

    print("KERNEL_OK")
</pallas_src>

<mosaic_0001>
module attributes {stable_mosaic.version = 11 : i64} {
  func.func @gfa_fused_kernel(%arg0: i32, %arg1: memref<1x32x16xf32, #tpu.memory_space<vmem>>, %arg2: memref<32x8xf32, #tpu.memory_space<vmem>>, %arg3: memref<32x32xf32, #tpu.memory_space<vmem>>, %arg4: memref<1x32x16xf32, #tpu.memory_space<vmem>>) attributes {dimension_semantics = [#tpu.dimension_semantics<parallel>], iteration_bounds = array<i64: 2>, scalar_prefetch = 0 : i64, scratch_operands = 0 : i64, tpu.core_type = #tpu.core_type<tc>, window_params = [{transform_indices = @transform_0, window_bounds = array<i64: 1, 32, 16>}, {pipeline_mode = #tpu.pipeline_mode<synchronous>, transform_indices = @transform_1, window_bounds = array<i64: 32, 8>}, {pipeline_mode = #tpu.pipeline_mode<synchronous>, transform_indices = @transform_2, window_bounds = array<i64: 32, 32>}, {transform_indices = @transform_3, window_bounds = array<i64: 1, 32, 16>}]} {
    %c0 = arith.constant 0 : index
    %c0_0 = arith.constant 0 : index
    %c0_1 = arith.constant 0 : index
    %0 = vector.load %arg1[%c0, %c0_0, %c0_1] : memref<1x32x16xf32, #tpu.memory_space<vmem>>, vector<1x32x16xf32>
    %1 = vector.shape_cast %0 : vector<1x32x16xf32> to vector<32x16xf32>
    %c0_2 = arith.constant 0 : index
    %c0_3 = arith.constant 0 : index
    %2 = vector.load %arg2[%c0_2, %c0_3] : memref<32x8xf32, #tpu.memory_space<vmem>>, vector<32x8xf32>
    %3 = vector.extract_strided_slice %2 {offsets = [0, 0], sizes = [32, 1], strides = [1, 1]} : vector<32x8xf32> to vector<32x1xf32>
    %4 = vector.extract_strided_slice %2 {offsets = [0, 1], sizes = [32, 1], strides = [1, 1]} : vector<32x8xf32> to vector<32x1xf32>
    %5 = vector.extract_strided_slice %2 {offsets = [0, 2], sizes = [32, 1], strides = [1, 1]} : vector<32x8xf32> to vector<32x1xf32>
    %6 = vector.extract_strided_slice %2 {offsets = [0, 3], sizes = [32, 1], strides = [1, 1]} : vector<32x8xf32> to vector<32x1xf32>
    %7 = vector.extract_strided_slice %2 {offsets = [0, 4], sizes = [32, 1], strides = [1, 1]} : vector<32x8xf32> to vector<32x1xf32>
    %8 = vector.broadcast %3 : vector<32x1xf32> to vector<32x16xf32>
    %9 = arith.mulf %1, %8 : vector<32x16xf32>
    %cst = arith.constant dense<0.000000e+00> : vector<16xf32>
    %10 = vector.multi_reduction <add>, %9, %cst [0] : vector<32x16xf32> to vector<16xf32>
    %11 = vector.shape_cast %10 : vector<16xf32> to vector<1x16xf32>
    %cst_4 = arith.constant dense<0xFF800000> : vector<1xf32>
    %12 = vector.multi_reduction <maximumf>, %11, %cst_4 [1] : vector<1x16xf32> to vector<1xf32>
    %13 = vector.shape_cast %12 : vector<1xf32> to vector<1x1xf32>
    %14 = vector.broadcast %13 : vector<1x1xf32> to vector<1x16xf32>
    %15 = arith.subf %11, %14 : vector<1x16xf32>
    %16 = math.exp %15 : vector<1x16xf32>
    %cst_5 = arith.constant dense<0.000000e+00> : vector<1xf32>
    %17 = vector.multi_reduction <add>, %16, %cst_5 [1] : vector<1x16xf32> to vector<1xf32>
    %18 = vector.shape_cast %17 : vector<1xf32> to vector<1x1xf32>
    %19 = vector.broadcast %18 : vector<1x1xf32> to vector<1x16xf32>
    %20 = arith.divf %16, %19 : vector<1x16xf32>
    %21 = vector.broadcast %20 : vector<1x16xf32> to vector<32x16xf32>
    %22 = arith.mulf %1, %21 : vector<32x16xf32>
    %cst_6 = arith.constant dense<0.000000e+00> : vector<32xf32>
    %23 = vector.multi_reduction <add>, %22, %cst_6 [1] : vector<32x16xf32> to vector<32xf32>
    %24 = vector.shape_cast %23 : vector<32xf32> to vector<32x1xf32>
    %c0_7 = arith.constant 0 : index
    %c0_8 = arith.constant 0 : index
    %25 = vector.load %arg3[%c0_7, %c0_8] : memref<32x32xf32, #tpu.memory_space<vmem>>, vector<32x32xf32>
    %cst_9 = arith.constant dense<0.000000e+00> : vector<32x1xf32>
    %26 = tpu.matmul %25, %24, %cst_9 {dimension_numbers = #tpu.dot_dimension_numbers<[1], [0], [0], [1], [0, 0, 1, 1], [], []>} : vector<32x32xf32>, vector<32x1xf32>, vector<32x1xf32> -> vector<32x1xf32>
    %27 = arith.mulf %26, %4 : vector<32x1xf32>
    %28 = arith.addf %27, %5 : vector<32x1xf32>
    %cst_10 = arith.constant dense<0.000000e+00> : vector<1xf32>
    %29 = vector.multi_reduction <add>, %28, %cst_10 [0] : vector<32x1xf32> to vector<1xf32>
    %30 = vector.shape_cast %29 : vector<1xf32> to vector<1x1xf32>
    %cst_11 = arith.constant 3.200000e+01 : f32
    %31 = vector.broadcast %cst_11 : f32 to vector<1x1xf32>
    %32 = arith.divf %30, %31 : vector<1x1xf32>
    %33 = vector.broadcast %32 : vector<1x1xf32> to vector<32x1xf32>
    %34 = arith.subf %28, %33 : vector<32x1xf32>
    %35 = arith.mulf %34, %34 : vector<32x1xf32>
    %cst_12 = arith.constant dense<0.000000e+00> : vector<1xf32>
    %36 = vector.multi_reduction <add>, %35, %cst_12 [0] : vector<32x1xf32> to vector<1xf32>
    %37 = vector.shape_cast %36 : vector<1xf32> to vector<1x1xf32>
    %cst_13 = arith.constant 3.200000e+01 : f32
    %38 = vector.broadcast %cst_13 : f32 to vector<1x1xf32>
    %39 = arith.divf %37, %38 : vector<1x1xf32>
    %40 = vector.broadcast %32 : vector<1x1xf32> to vector<32x1xf32>
    %41 = arith.subf %28, %40 : vector<32x1xf32>
    %cst_14 = arith.constant 9.99999974E-6 : f32
    %42 = vector.broadcast %cst_14 : f32 to vector<1x1xf32>
    %43 = arith.addf %39, %42 : vector<1x1xf32>
    %44 = math.rsqrt %43 : vector<1x1xf32>
    %45 = vector.broadcast %44 : vector<1x1xf32> to vector<32x1xf32>
    %46 = arith.mulf %41, %45 : vector<32x1xf32>
    %47 = arith.mulf %46, %6 : vector<32x1xf32>
    %48 = arith.addf %47, %7 : vector<32x1xf32>
    %cst_15 = arith.constant 0.000000e+00 : f32
    %49 = vector.broadcast %cst_15 : f32 to vector<32x1xf32>
    %50 = arith.maximumf %48, %49 : vector<32x1xf32>
    %51 = vector.broadcast %50 : vector<32x1xf32> to vector<32x16xf32>
    %52 = arith.addf %1, %51 : vector<32x16xf32>
    %c0_16 = arith.constant 0 : index
    %c0_17 = arith.constant 0 : index
    %c0_18 = arith.constant 0 : index
    %53 = vector.load %arg4[%c0_16, %c0_17, %c0_18] : memref<1x32x16xf32, #tpu.memory_space<vmem>>, vector<1x32x16xf32>
    %54 = vector.shape_cast %53 : vector<1x32x16xf32> to vector<32x16xf32>
    %55 = vector.shape_cast %52 : vector<32x16xf32> to vector<1x32x16xf32>
    tpu.vector_store %arg4[%c0_16, %c0_17, %c0_18], %55 {strides = array<i32>} : memref<1x32x16xf32, #tpu.memory_space<vmem>>, vector<1x32x16xf32>,
    return
  }
  func.func @transform_0(%arg0: i32) -> (i32, i32, i32) {
    %c0_i32 = arith.constant 0 : i32
    %c0_i32_0 = arith.constant 0 : i32
    %c0_i32_1 = arith.constant 0 : i32
    return %arg0, %c0_i32, %c0_i32_0 : i32, i32, i32
  }
  func.func @transform_1(%arg0: i32) -> (i32, i32) {
    %c0_i32 = arith.constant 0 : i32
    %c0_i32_0 = arith.constant 0 : i32
    %c0_i32_1 = arith.constant 0 : i32
    return %c0_i32, %c0_i32_0 : i32, i32
  }
  func.func @transform_2(%arg0: i32) -> (i32, i32) {
    %c0_i32 = arith.constant 0 : i32
    %c0_i32_0 = arith.constant 0 : i32
    %c0_i32_1 = arith.constant 0 : i32
    return %c0_i32, %c0_i32_0 : i32, i32
  }
  func.func @transform_3(%arg0: i32) -> (i32, i32, i32) {
    %c0_i32 = arith.constant 0 : i32
    %c0_i32_0 = arith.constant 0 : i32
    %c0_i32_1 = arith.constant 0 : i32
    return %arg0, %c0_i32, %c0_i32_0 : i32, i32, i32
  }
}

</mosaic_0001>

<llo_original>
// kernel: tpu_custom_call.1
$region0: #{tpu_custom_call.1}
  #allocation0 [shape = 'u32[]', space=smem, size = 0x4, offset = 0x4, fixed_abs, tag = 'smem constant byte address 0x4 - core index']
  #allocation1 [shape = 'u32[144,128]{1,0:T(1,128)}', space=vmem, size = 0x12000, scoped, tag = 'internal scratch']
  %s0 = inlined_call_operand.vmem [shape: f32[2,32,16], index: 0, kind: input, shape index: {}]
  %s1 = inlined_call_operand.vmem [shape: f32[32,8], index: 1, kind: input, shape index: {}]
  %s2 = inlined_call_operand.vmem [shape: f32[32,32], index: 2, kind: input, shape index: {}]
  %s3 = inlined_call_operand.vmem [shape: f32[2,32,16], index: 3, kind: output, shape index: {}]
  %s4 = sld [smem:[#allocation0]]
  $region45: #{tpu_custom_call.1} parent=0
    _
  %s6 = ssub.s32 1, %s4
  %s7 = scalar_select 0, %s6, %s4
  loop: start=0, step=1, limit=4
  $region2: #{tpu_custom_call.1} parent=0 // loop_pre_header
    _
  $region3: #{tpu_custom_call.1} parent=0 // loop_header
    %s9 = sphi 0, %s13
    %p10 = scmp.ge.s32.totalorder %s9, 4
    %s19 = sphi 0, %s21
    %s22 = sphi 0, %s19
    %s23 = sphi 0, %s22
    %s39 = sphi 0, %s23
    %s43 = sphi 0, %s43
    %s45 = sphi 0, %s43
    %s46 = sphi 0, %s45
    %s60 = sphi 0, %s46
    %s64 = sphi 0, %s64
    %s66 = sphi 0, %s64
    %s67 = sphi 0, %s66
    %s81 = sphi 0, %s67
    %s87 = sphi 0, %s89
    %s90 = sphi 0, %s87
    %s91 = sphi 0, %s90
    %s107 = sphi 0, %s91
  $region4: #{tpu_custom_call.1} parent=0 // loop_header_branch
    %12 = sbr.rel (%p10) target = $region8
  $region5: #{tpu_custom_call.1} parent=0 // loop_body
    %s14 = ssub.s32 %s9, 1
    %s15 = ssub.s32 %s9, 2
    %s16 = sadd.s32 %s9, 1
    %s17 = ssub.s32 %s9, %s16
    %p18 = scmp.eq.s32.totalorder %s17, 0
    %s20 = sadd.s32 %s19, 1
    %s21 = scalar_select %p18, %s19, %s20
    %p24 = pneg %p18
    %p25 = scmp.eq.s32.totalorder %s9, 1
    %p26 = por %p24, %p25
    %p27 = scmp.ne.s32.totalorder %s19, %s22
    %p28 = scmp.eq.s32.totalorder %s9, 0
    %p29 = por %p27, %p28
    %p30 = scmp.ne.s32.totalorder %s19, %s22
    %p31 = scmp.eq.s32.totalorder %s14, 1
    %p32 = por %p30, %p31
    %p33 = scmp.ne.s32.totalorder %s22, %s23
    %p34 = scmp.eq.s32.totalorder %s14, 0
    %p35 = por %p33, %p34
    %p36 = scmp.ne.s32.totalorder %s22, %s23
    %p37 = scmp.eq.s32.totalorder %s15, 1
    %p38 = por %p36, %p37
    %p40 = scmp.ne.s32.totalorder %s23, %s39
    %p41 = scmp.eq.s32.totalorder %s15, 0
    %p42 = por %p40, %p41
    %s44 = sadd.s32 %s43, 1
    %p47 = scmp.eq.s32.totalorder %s9, 1
    %p48 = scmp.ne.s32.totalorder %s43, %s45
    %p49 = scmp.eq.s32.totalorder %s9, 0
    %p50 = por %p48, %p49
    %p51 = scmp.ne.s32.totalorder %s43, %s45
    %p52 = scmp.eq.s32.totalorder %s14, 1
    %p53 = por %p51, %p52
    %p54 = scmp.ne.s32.totalorder %s45, %s46
    %p55 = scmp.eq.s32.totalorder %s14, 0
    %p56 = por %p54, %p55
    %p57 = scmp.ne.s32.totalorder %s45, %s46
    %p58 = scmp.eq.s32.totalorder %s15, 1
    %p59 = por %p57, %p58
    %p61 = scmp.ne.s32.totalorder %s46, %s60
    %p62 = scmp.eq.s32.totalorder %s15, 0
    %p63 = por %p61, %p62
    %s65 = sadd.s32 %s64, 1
    %p68 = scmp.eq.s32.totalorder %s9, 1
    %p69 = scmp.ne.s32.totalorder %s64, %s66
    %p70 = scmp.eq.s32.totalorder %s9, 0
    %p71 = por %p69, %p70
    %p72 = scmp.ne.s32.totalorder %s64, %s66
    %p73 = scmp.eq.s32.totalorder %s14, 1
    %p74 = por %p72, %p73
    %p75 = scmp.ne.s32.totalorder %s66, %s67
    %p76 = scmp.eq.s32.totalorder %s14, 0
    %p77 = por %p75, %p76
    %p78 = scmp.ne.s32.totalorder %s66, %s67
    %p79 = scmp.eq.s32.totalorder %s15, 1
    %p80 = por %p78, %p79
    %p82 = scmp.ne.s32.totalorder %s67, %s81
    %p83 = scmp.eq.s32.totalorder %s15, 0
    %p84 = por %p82, %p83
    %s85 = ssub.s32 %s9, %s16
    %p86 = scmp.eq.s32.totalorder %s85, 0
    %s88 = sadd.s32 %s87, 1
    %s89 = scalar_select %p86, %s87, %s88
    %p92 = pneg %p86
    %p93 = scmp.eq.s32.totalorder %s9, 1
    %p94 = por %p92, %p93
    %p95 = scmp.ne.s32.totalorder %s87, %s90
    %p96 = scmp.eq.s32.totalorder %s9, 0
    %p97 = por %p95, %p96
    %p98 = scmp.ne.s32.totalorder %s87, %s90
    %p99 = scmp.eq.s32.totalorder %s14, 1
    %p100 = por %p98, %p99
    %p101 = scmp.ne.s32.totalorder %s90, %s91
    %p102 = scmp.eq.s32.totalorder %s14, 0
    %p103 = por %p101, %p102
    %p104 = scmp.ne.s32.totalorder %s90, %s91
    %p105 = scmp.eq.s32.totalorder %s15, 1
    %p106 = por %p104, %p105
    %p108 = scmp.ne.s32.totalorder %s91, %s107
    %p109 = scmp.eq.s32.totalorder %s15, 0
    %p110 = por %p108, %p109
    %p111 = scmp.le.s32.totalorder 1, %s9
    %p112 = scmp.lt.s32.totalorder %s9, 3
    %p113 = pnand %p111, %p112
    %p114 = pneg %p113
    // Predicated region
    $region9: #{tpu_custom_call.1} parent=5 // pred_check
      _
    $region10: #{tpu_custom_call.1} parent=5 // pred_check_branch
      %116 = sbr.rel (%p113) target = $region12
    $region11: #{tpu_custom_call.1} parent=5 // pred_region
      %s117 = ssub.s32 %s9, 1
      // Predicated region
      $region13: #{tpu_custom_call.1} parent=11 // pred_check
        %p118 = pneg %p56
      $region14: #{tpu_custom_call.1} parent=11 // pred_check_branch
        %120 = sbr.rel (%p118) target = $region16
      $region15: #{tpu_custom_call.1} parent=11 // pred_region
        _
      $region16: #{tpu_custom_call.1} parent=11 // pred_fallthru
        _
      // Predicated region
      $region17: #{tpu_custom_call.1} parent=11 // pred_check
        %p121 = pneg %p77
      $region18: #{tpu_custom_call.1} parent=11 // pred_check_branch
        %123 = sbr.rel (%p121) target = $region20
      $region19: #{tpu_custom_call.1} parent=11 // pred_region
        _
      $region20: #{tpu_custom_call.1} parent=11 // pred_fallthru
        _
    $region12: #{tpu_custom_call.1} parent=5 // pred_fallthru
      _
    %p124 = scmp.lt.s32.totalorder %s9, 2
    // Predicated region
    $region21: #{tpu_custom_call.1} parent=5 // pred_check
      %p125 = pneg %p124
    $region22: #{tpu_custom_call.1} parent=5 // pred_check_branch
      %127 = sbr.rel (%p125) target = $region24
    $region23: #{tpu_custom_call.1} parent=5 // pred_region
      // Predicated region
      $region25: #{tpu_custom_call.1} parent=23 // pred_check
        %p128 = pneg %p29
      $region26: #{tpu_custom_call.1} parent=23 // pred_check_branch
        %130 = sbr.rel (%p128) target = $region28
      $region27: #{tpu_custom_call.1} parent=23 // pred_region
        %p131 = scmp.lt.s32.totalorder %s9, 1
        %s132 = scalar_select %p131, %s9, 1
        %s133 = smul.addr %s132, 4
        %s134 = smul.addr %s133, 8
        %s135 = scalar_lea.vmem %s0, %s134
      $region28: #{tpu_custom_call.1} parent=23 // pred_fallthru
        _
    $region24: #{tpu_custom_call.1} parent=5 // pred_fallthru
      _
    %p136 = scmp.le.s32.totalorder 1, %s9
    %p137 = scmp.lt.s32.totalorder %s9, 3
    %p138 = pnand %p136, %p137
    %p139 = pneg %p138
    // Predicated region
    $region29: #{tpu_custom_call.1} parent=5 // pred_check
      _
    $region30: #{tpu_custom_call.1} parent=5 // pred_check_branch
      %141 = sbr.rel (%p138) target = $region32
    $region31: #{tpu_custom_call.1} parent=5 // pred_region
      %s142 = ssub.s32 %s9, 1
      %p143 = scmp.lt.s32.totalorder %s14, 1
      %s144 = scalar_select %p143, %s14, 1
      %s145 = smul.addr %s144, 4
      %s146 = smul.addr %s145, 8
      %s147 = scalar_lea.vmem %s0, %s146
      %p148 = pneg %p35
      %p149 = pneg %p32
      %p150 = pneg %p56
      %p151 = pneg %p53
      %p152 = pneg %p77
      %p153 = pneg %p74
      %p154 = pneg %p103
      %p155 = pneg %p100
      %p156 = scmp.lt.s32.totalorder %s14, 1
      %s157 = scalar_select %p156, %s14, 1
      %s158 = smul.addr %s157, 4
      %s159 = smul.addr %s158, 8
      %s160 = scalar_lea.vmem %s3, %s159
      %p161 = scmp.lt.s32.totalorder %s14, 1
      %s162 = scalar_select %p161, %s14, 1
      %s163 = smul.addr %s162, 4
      %s164 = smul.addr %s163, 8
      %s165 = scalar_lea.vmem %s0, %s164
      %p166 = scmp.lt.s32.totalorder %s14, 1
      %s167 = scalar_select %p166, %s14, 1
      %s168 = smul.addr %s167, 4
      %s169 = smul.addr %s168, 8
      %s170 = scalar_lea.vmem %s3, %s169
      %v171 = vld [vmem:[%s165] sm:$0xff]
      %v172 = vld [vmem:[%s165 + $0x8] sm:$0xff]
      %v173 = vld [vmem:[%s165 + $0x10] sm:$0xff]
      %v174 = vld [vmem:[%s165 + $0x18] sm:$0xff]
      %v175 = vld [vmem:[%s1] sm:$0xff]
      %v176 = vld [vmem:[%s1 + $0x8] sm:$0xff]
      %v177 = vld [vmem:[%s1 + $0x10] sm:$0xff]
      %v178 = vld [vmem:[%s1 + $0x18] sm:$0xff]
      %180 = vset.pattern.permute.xlu0 0
      %181 = vperm.xlu0 %180, %v175
      %v182 = vpop.permute.xlu0 %181
      %185 = vset.pattern.permute.xlu0 0
      %186 = vperm.xlu0 %185, %v176
      %v187 = vpop.permute.xlu0 %186
      %190 = vset.pattern.permute.xlu0 0
      %191 = vperm.xlu0 %190, %v177
      %v192 = vpop.permute.xlu0 %191
      %195 = vset.pattern.permute.xlu0 0
      %196 = vperm.xlu0 %195, %v178
      %v197 = vpop.permute.xlu0 %196
      %v199 = vmul.f32 %v171, %v182
      %v200 = vmul.f32 %v172, %v187
      %v201 = vmul.f32 %v173, %v192
      %v202 = vmul.f32 %v174, %v197
      %vm203 = vcmask 130048
      %v204 = vsel %vm203, %v199, 0.0
      %v205 = vsel %vm203, %v200, 0.0
      %v206 = vadd.f32 %v204, %v205
      %v207 = vsel %vm203, %v201, 0.0
      %v208 = vadd.f32 %v206, %v207
      %v209 = vsel %vm203, %v202, 0.0
      %v210 = vadd.f32 %v208, %v209
      %v211 = vrot.slane %v210, 4
      %v212 = vadd.f32 %v210, %v211
      %v213 = vrot.slane %v212, 2
      %v214 = vadd.f32 %v212, %v213
      %v215 = vrot.slane %v214, 1
      %v216 = vadd.f32 %v214, %v215
      %v217 = vsel %vm203, %v216, -inf
      %218 = vmax.xlane.f32.xlu0 %v217
      %v219 = vpop.xlane.xlu0 %218
      %v220 = vsub.f32 %v216, %v219
      %v221 = vmul.f32 %v220, 1.442695
      %v222 = vpow.pop %v221
      %v223 = vsel %vm203, %v222, 0.0
      %224 = vadd.xlane.f32.xlu0 %v223
      %v225 = vpop.xlane.xlu0 %224
      %v226 = vrcp.pop %v225
      %v227 = vmul.f32 %v222, %v226
      %v228 = vmul.f32 %v171, %v227
      %v229 = vmul.f32 %v172, %v227
      %v230 = vmul.f32 %v173, %v227
      %v231 = vmul.f32 %v174, %v227
      %v232 = vsel %vm203, %v228, 0.0
      %233 = vadd.xlane.f32.xlu0 %v232
      %v234 = vpop.xlane.xlu0 %233
      %v235 = vsel %vm203, %v229, 0.0
      %236 = vadd.xlane.f32.xlu0 %v235
      %v237 = vpop.xlane.xlu0 %236
      %v238 = vsel %vm203, %v230, 0.0
      %239 = vadd.xlane.f32.xlu0 %v238
      %v240 = vpop.xlane.xlu0 %239
      %v241 = vsel %vm203, %v231, 0.0
      %242 = vadd.xlane.f32.xlu0 %v241
      %v243 = vpop.xlane.xlu0 %242
      %v244 = vld [vmem:[%s2] sm:$0xff]
      %v245 = vld [vmem:[%s2 + $0x8] sm:$0xff]
      %v246 = vld [vmem:[%s2 + $0x10] sm:$0xff]
      %v247 = vld [vmem:[%s2 + $0x18] sm:$0xff]
      %vm248 = vcmask 261120
      %v250 = vsel %vm248, %v244, 0
      %v253 = vsel %vm248, %v245, 0
      %v256 = vsel %vm248, %v246, 0
      %v259 = vsel %vm248, %v247, 0
      %261 = vmatprep.subr.mxu0 0.0
      %262 = vmatpush1.msra.mxu0 0.0
      %263 = vmatprep.subr.mxu0 0.0
      %264 = vmatpush1.msra.mxu0 0.0
      %265 = vmatprep.subr.mxu0 0.0
      %266 = vmatpush1.msra.mxu0 0.0
      %267 = vmatprep.subr.mxu0 0.0
      %268 = vmatpush1.msra.mxu0 0.0
      %269 = vmatprep.subr.mxu0 0.0
      %270 = vmatpush1.msra.mxu0 0.0
      %271 = vmatprep.subr.mxu0 0.0
      %272 = vmatpush1.msra.mxu0 0.0
      %273 = vmatprep.subr.mxu0 0.0
      %274 = vmatpush1.msra.mxu0 0.0
      %275 = vmatprep.subr.mxu0 0.0
      %276 = vmatpush1.msra.mxu0 0.0
      %277 = vmatprep.subr.mxu0 0.0
      %278 = vmatpush1.msra.mxu0 0.0
      %279 = vmatprep.subr.mxu0 0.0
      %280 = vmatpush1.msra.mxu0 0.0
      %281 = vmatprep.subr.mxu0 0.0
      %282 = vmatpush1.msra.mxu0 0.0
      %283 = vmatprep.subr.mxu0 0.0
      %284 = vmatpush1.msra.mxu0 0.0
      %285 = vmatprep.subr.mxu0 0.0
      %286 = vmatpush1.msra.mxu0 %v243
      %287 = vmatprep.subr.mxu0 0.0
      %288 = vmatpush1.msra.mxu0 %v240
      %289 = vmatprep.subr.mxu0 0.0
      %290 = vmatpush1.msra.mxu0 %v237
      %291 = vmatprep.subr.mxu0 0.0
      %292 = vmatpush1.msra.mxu0 %v234
      %293 = vmatprep.subr.mxu0 0.0
      %294 = vmatpush2.msra.mxu0 0.0
      %295 = vmatprep.subr.mxu0 0.0
      %296 = vmatpush2.msra.mxu0 0.0
      %297 = vmatprep.subr.mxu0 0.0
      %298 = vmatpush2.msra.mxu0 0.0
      %299 = vmatprep.subr.mxu0 0.0
      %300 = vmatpush2.msra.mxu0 0.0
      %301 = vmatprep.subr.mxu0 0.0
      %302 = vmatpush2.msra.mxu0 0.0
      %303 = vmatprep.subr.mxu0 0.0
      %304 = vmatpush2.msra.mxu0 0.0
      %305 = vmatprep.subr.mxu0 0.0
      %306 = vmatpush2.msra.mxu0 0.0
      %307 = vmatprep.subr.mxu0 0.0
      %308 = vmatpush2.msra.mxu0 0.0
      %309 = vmatprep.subr.mxu0 0.0
      %310 = vmatpush2.msra.mxu0 0.0
      %311 = vmatprep.subr.mxu0 0.0
      %312 = vmatpush2.msra.mxu0 0.0
      %313 = vmatprep.subr.mxu0 0.0
      %314 = vmatpush2.msra.mxu0 0.0
      %315 = vmatprep.subr.mxu0 0.0
      %316 = vmatpush2.msra.mxu0 0.0
      %317 = vmatprep.subr.mxu0 0.0
      %318 = vmatpush2.msra.mxu0 0.0
      %319 = vmatprep.subr.mxu0 0.0
      %320 = vmatpush2.msra.mxu0 0.0
      %321 = vmatprep.subr.mxu0 0.0
      %322 = vmatpush2.msra.mxu0 0.0
      %323 = vmatprep.subr.mxu0 0.0
      %324 = vmatpush2.msra.mxu0 0.0
      %325 = vmatprep.mubr.f32.mxu0 0.0
      %326 = vmatmul.mubr.f32.gmra.mxu0 %v250
      %v327 = vpop.f32.mrf.mxu0
      %v328 = vadd.f32 0.0, %v327
      %v329 = vpop.f32.mrf.mxu0
      %330 = vmatprep.mubr.f32.mxu0 0.0
      %331 = vmatmul.mubr.f32.gmra.mxu0 %v253
      %v332 = vpop.f32.mrf.mxu0
      %v333 = vadd.f32 0.0, %v332
      %v334 = vpop.f32.mrf.mxu0
      %335 = vmatprep.mubr.f32.mxu0 0.0
      %336 = vmatmul.mubr.f32.gmra.mxu0 %v256
      %v337 = vpop.f32.mrf.mxu0
      %v338 = vadd.f32 0.0, %v337
      %v339 = vpop.f32.mrf.mxu0
      %340 = vmatprep.mubr.f32.mxu0 0.0
      %341 = vmatmul.mubr.f32.gmra.mxu0 %v259
      %v342 = vpop.f32.mrf.mxu0
      %v343 = vadd.f32 0.0, %v342
      %v344 = vpop.f32.mrf.mxu0
      %345 = vdwg.mxu0
      %346 = vrot.lane.b32.xlu0 %v175, 127
      %v347 = vpop.permute.xlu0 %346
      %348 = vrot.lane.b32.xlu0 %v176, 127
      %v349 = vpop.permute.xlu0 %348
      %350 = vrot.lane.b32.xlu0 %v177, 127
      %v351 = vpop.permute.xlu0 %350
      %352 = vrot.lane.b32.xlu0 %v178, 127
      %v353 = vpop.permute.xlu0 %352
      %v358 = vmul.f32 %v328, %v347
      %v359 = vmul.f32 %v333, %v349
      %v360 = vmul.f32 %v338, %v351
      %v361 = vmul.f32 %v343, %v353
      %362 = vrot.lane.b32.xlu0 %v175, 126
      %v363 = vpop.permute.xlu0 %362
      %364 = vrot.lane.b32.xlu0 %v176, 126
      %v365 = vpop.permute.xlu0 %364
      %366 = vrot.lane.b32.xlu0 %v177, 126
      %v367 = vpop.permute.xlu0 %366
      %368 = vrot.lane.b32.xlu0 %v178, 126
      %v369 = vpop.permute.xlu0 %368
      %v374 = vadd.f32 %v358, %v363
      %v375 = vadd.f32 %v359, %v365
      %v376 = vadd.f32 %v360, %v367
      %v377 = vadd.f32 %v361, %v369
      %vm378 = vcmask 7168
      %v379 = vsel %vm378, %v374, 0.0
      %v380 = vsel %vm378, %v375, 0.0
      %v381 = vadd.f32 %v379, %v380
      %v382 = vsel %vm378, %v376, 0.0
      %v383 = vadd.f32 %v381, %v382
      %v384 = vsel %vm378, %v377, 0.0
      %v385 = vadd.f32 %v383, %v384
      %v386 = vrot.slane %v385, 4
      %v387 = vadd.f32 %v385, %v386
      %v388 = vrot.slane %v387, 2
      %v389 = vadd.f32 %v387, %v388
      %v390 = vrot.slane %v389, 1
      %v391 = vadd.f32 %v389, %v390
      %v392 = vrcp.pop 32.0
      %v393 = vmul.f32 %v391, %v392
      %v394 = vsub.f32 %v374, %v393
      %v395 = vsub.f32 %v375, %v393
      %v396 = vsub.f32 %v376, %v393
      %v397 = vsub.f32 %v377, %v393
      %v398 = vmul.f32 %v394, %v394
      %v399 = vmul.f32 %v395, %v395
      %v400 = vmul.f32 %v396, %v396
      %v401 = vmul.f32 %v397, %v397
      %v402 = vsel %vm378, %v398, 0.0
      %v403 = vsel %vm378, %v399, 0.0
      %v404 = vadd.f32 %v402, %v403
      %v405 = vsel %vm378, %v400, 0.0
      %v406 = vadd.f32 %v404, %v405
      %v407 = vsel %vm378, %v401, 0.0
      %v408 = vadd.f32 %v406, %v407
      %v409 = vrot.slane %v408, 4
      %v410 = vadd.f32 %v408, %v409
      %v411 = vrot.slane %v410, 2
      %v412 = vadd.f32 %v410, %v411
      %v413 = vrot.slane %v412, 1
      %v414 = vadd.f32 %v412, %v413
      %v415 = vmul.f32 %v414, %v392
      %v416 = vadd.f32 %v415, 1e-05
      %v417 = vrsqrt.pop %v416
      %v418 = vmul.f32 %v394, %v417
      %v419 = vmul.f32 %v395, %v417
      %v420 = vmul.f32 %v396, %v417
      %v421 = vmul.f32 %v397, %v417
      %422 = vrot.lane.b32.xlu0 %v175, 125
      %v423 = vpop.permute.xlu0 %422
      %424 = vrot.lane.b32.xlu0 %v176, 125
      %v425 = vpop.permute.xlu0 %424
      %426 = vrot.lane.b32.xlu0 %v177, 125
      %v427 = vpop.permute.xlu0 %426
      %428 = vrot.lane.b32.xlu0 %v178, 125
      %v429 = vpop.permute.xlu0 %428
      %v434 = vmul.f32 %v418, %v423
      %v435 = vmul.f32 %v419, %v425
      %v436 = vmul.f32 %v420, %v427
      %v437 = vmul.f32 %v421, %v429
      %438 = vrot.lane.b32.xlu0 %v175, 124
      %v439 = vpop.permute.xlu0 %438
      %440 = vrot.lane.b32.xlu0 %v176, 124
      %v441 = vpop.permute.xlu0 %440
      %442 = vrot.lane.b32.xlu0 %v177, 124
      %v443 = vpop.permute.xlu0 %442
      %444 = vrot.lane.b32.xlu0 %v178, 124
      %v445 = vpop.permute.xlu0 %444
      %v450 = vadd.f32 %v434, %v439
      %v451 = vadd.f32 %v435, %v441
      %v452 = vadd.f32 %v436, %v443
      %v453 = vadd.f32 %v437, %v445
      %v454 = vmax.f32 %v450, 0.0
      %v455 = vmax.f32 %v451, 0.0
      %v456 = vmax.f32 %v452, 0.0
      %v457 = vmax.f32 %v453, 0.0
      %459 = vset.pattern.permute.xlu0 0
      %460 = vperm.xlu0 %459, %v454
      %v461 = vpop.permute.xlu0 %460
      %464 = vset.pattern.permute.xlu0 0
      %465 = vperm.xlu0 %464, %v455
      %v466 = vpop.permute.xlu0 %465
      %469 = vset.pattern.permute.xlu0 0
      %470 = vperm.xlu0 %469, %v456
      %v471 = vpop.permute.xlu0 %470
      %474 = vset.pattern.permute.xlu0 0
      %475 = vperm.xlu0 %474, %v457
      %v476 = vpop.permute.xlu0 %475
      %v478 = vadd.f32 %v171, %v461
      %v479 = vadd.f32 %v172, %v466
      %v480 = vadd.f32 %v173, %v471
      %v481 = vadd.f32 %v174, %v476
      %482 = vst.msk [vmem:[%s170] sm:$0xff] %vm203, %v478
      %483 = vst.msk [vmem:[%s170 + $0x8] sm:$0xff] %vm203, %v479
      %484 = vst.msk [vmem:[%s170 + $0x10] sm:$0xff] %vm203, %v480
      %485 = vst.msk [vmem:[%s170 + $0x18] sm:$0xff] %vm203, %v481
      %p486 = scmp.lt.s32.totalorder %s14, 1
      %s487 = scalar_select %p486, %s14, 1
      %s488 = smul.addr %s487, 4
      %s489 = smul.addr %s488, 8
      %s490 = scalar_lea.vmem %s3, %s489
      // Predicated region
      $region33: #{tpu_custom_call.1} parent=31 // pred_check
        %p491 = pneg %p100
      $region34: #{tpu_custom_call.1} parent=31 // pred_check_branch
        %493 = sbr.rel (%p491) target = $region36
      $region35: #{tpu_custom_call.1} parent=31 // pred_region
        _
      $region36: #{tpu_custom_call.1} parent=31 // pred_fallthru
        _
    $region32: #{tpu_custom_call.1} parent=5 // pred_fallthru
      _
    %p494 = scmp.le.s32.totalorder 2, %s9
    // Predicated region
    $region37: #{tpu_custom_call.1} parent=5 // pred_check
      %p495 = pneg %p494
    $region38: #{tpu_custom_call.1} parent=5 // pred_check_branch
      %497 = sbr.rel (%p495) target = $region40
    $region39: #{tpu_custom_call.1} parent=5 // pred_region
      %s498 = ssub.s32 %s9, 2
      // Predicated region
      $region41: #{tpu_custom_call.1} parent=39 // pred_check
        %p499 = pneg %p106
      $region42: #{tpu_custom_call.1} parent=39 // pred_check_branch
        %501 = sbr.rel (%p499) target = $region44
      $region43: #{tpu_custom_call.1} parent=39 // pred_region
        %p502 = scmp.lt.s32.totalorder %s15, 1
        %s503 = scalar_select %p502, %s15, 1
        %s504 = smul.addr %s503, 4
        %s505 = smul.addr %s504, 8
        %s506 = scalar_lea.vmem %s3, %s505
      $region44: #{tpu_custom_call.1} parent=39 // pred_fallthru
        _
    $region40: #{tpu_custom_call.1} parent=5 // pred_fallthru
      _
  $region6: #{tpu_custom_call.1} parent=0 // loop_footer
    %s13 = sadd.s32 1, %s9
  $region7: #{tpu_custom_call.1} parent=0 // loop_footer_branch
    %8 = sbr.rel target = $region3
  $region8: #{tpu_custom_call.1} parent=0 // loop_exit
    _

</llo_original>
